<compile_context>
chip_gen: v5e
topology: v5e:2x2
jax: 0.10.0
libtpu: 0.0.40
codegen_flags: <defaults>
</compile_context>

<pallas_src>
import functools

import jax
import jax.numpy as jnp
from jax.experimental import pallas as pl
from jax.experimental.pallas import tpu as pltpu

EPS = 1e-5    # nn.LayerNorm default
LANES = 128


def _sum_all(h):
    # (rows, lanes) -> (1, 1).  Sum the row/sublane axis first (plain VPU adds
    # across vregs), then a single cross-lane XLU reduce on the small remainder.
    return jnp.sum(jnp.sum(h, axis=0, keepdims=True), axis=1, keepdims=True)


def _silu(h):
    # silu(x) = x * sigmoid(x);  sigmoid(x) = 0.5*(tanh(x/2) + 1)
    # -> one EUP push per vector (vs exp + reciprocal = 2) and exact identity.
    return h * (0.5 * jnp.tanh(0.5 * h) + 0.5)


def _make_kernel(C, N2, HW):
    """Kernel factory closing over the static geometry."""
    n1_inv = 1.0 / float(C * N2 * HW)     # elements in first LayerNorm
    n2_inv = 1.0 / float(C * HW)          # elements in second LayerNorm

    def kernel(x_ref, p1_ref, g1_ref, be1_ref, p2_ref, g2_ref, be2_ref, o_ref):
        p1 = p1_ref[...].astype(jnp.float32)   # (C, 3*N2): [w1_even | w1_odd | b1]
        p2 = p2_ref[...].astype(jnp.float32)   # (C, N2+3): [w2 | b2 | w3 | b3]

        # ---- first_conv: grouped 1x1 conv, 2 input channels per group --------
        # x_ref is one sample viewed as (C, N*HW); lane block k of row c holds
        # input channel c*N + k.  Mid channel (c, j) pairs lane blocks 2j, 2j+1.
        hs = []
        s = None
        ss = None
        for j in range(N2):
            xe = x_ref[:, (2 * j) * HW:(2 * j + 1) * HW]        # (C, HW)
            xo = x_ref[:, (2 * j + 1) * HW:(2 * j + 2) * HW]    # (C, HW)
            hj = (p1[:, j:j + 1] * xe
                  + p1[:, N2 + j:N2 + j + 1] * xo
                  + p1[:, 2 * N2 + j:2 * N2 + j + 1])
            hs.append(hj)
            sj = _sum_all(hj)
            ssj = _sum_all(hj * hj)
            s = sj if s is None else s + sj
            ss = ssj if ss is None else ss + ssj

        # ---- first LayerNorm statistics (fused sum / sum-of-squares) ---------
        mu = s * n1_inv
        var = jnp.maximum(ss * n1_inv - mu * mu, 0.0)   # clamp: E[x^2]-mu^2 < 0 possible
        inv = jax.lax.rsqrt(var + EPS)

        # ---- normalize + SiLU + second_conv (grouped 1x1, N2 in-ch / group) --
        acc = None
        for j in range(N2):
            g1j = g1_ref[:, j * HW:(j + 1) * HW].astype(jnp.float32)
            be1j = be1_ref[:, j * HW:(j + 1) * HW].astype(jnp.float32)
            hn = _silu((hs[j] - mu) * inv * g1j + be1j)
            t = p2[:, j:j + 1] * hn
            acc = t if acc is None else acc + t
        h2 = acc + p2[:, N2:N2 + 1]                      # + b2

        # ---- second LayerNorm + SiLU + depthwise third_conv ------------------
        s2 = _sum_all(h2)
        ss2 = _sum_all(h2 * h2)
        mu2 = s2 * n2_inv
        var2 = jnp.maximum(ss2 * n2_inv - mu2 * mu2, 0.0)
        inv2 = jax.lax.rsqrt(var2 + EPS)
        h2 = ((h2 - mu2) * inv2 * g2_ref[...].astype(jnp.float32)
              + be2_ref[...].astype(jnp.float32))
        h2 = _silu(h2)
        o_ref[...] = (p2[:, N2 + 1:N2 + 2] * h2 + p2[:, N2 + 2:N2 + 3]).astype(o_ref.dtype)

    return kernel


def prepare_params(params, *, C, N, H, W, norm_param_dtype=jnp.float32):
    """Fold PyTorch-native parameters into the kernel's lane-blocked layouts.

    Pure reshapes / tiny concatenations on parameters only.  Call ONCE and reuse
    across forward passes.  For realistic widths pass
    norm_param_dtype=jnp.bfloat16 to halve gamma/beta HBM traffic (LayerNorm
    statistics and accumulation remain f32 in-kernel).
    """
    w1, b1, g1, be1, w2, b2, g2, be2, w3, b3 = params
    HW = H * W
    Cmid = C * N // 2
    N2 = Cmid // C

    # first_conv taps / bias, arranged per (output-group row c, tap j).
    w1e = w1[:, 0].reshape(C, N2)
    w1o = w1[:, 1].reshape(C, N2)
    p1 = jnp.concatenate([w1e, w1o, b1.reshape(C, N2)], axis=1).astype(jnp.float32)
    # second/third conv scalars packed into one small array.
    p2 = jnp.concatenate(
        [w2, b2[:, None], w3[:, None], b3[:, None]], axis=1).astype(jnp.float32)

    g1f = g1.reshape(C, N2 * HW).astype(norm_param_dtype)
    be1f = be1.reshape(C, N2 * HW).astype(norm_param_dtype)
    g2f = g2.reshape(C, HW).astype(norm_param_dtype)
    be2f = be2.reshape(C, HW).astype(norm_param_dtype)
    return (p1, g1f, be1f, p2, g2f, be2f)


def controlnet_block(x, prepared, *, C, N, H, W):
    """x: (B, C*N, H, W) float32 -> (B, C, H, W) float32."""
    B = x.shape[0]
    HW = H * W
    Cin = C * N
    Cmid = Cin // 2
    N2 = Cmid // C
    assert N % 2 == 0, "num_controlnets must be even (nested grouped-conv structure)"
    assert HW % LANES == 0, "H*W must be a multiple of 128 (lane width)"
    assert x.shape == (B, Cin, H, W)

    p1, g1f, be1f, p2, g2f, be2f = prepared

    # Copy-free view: (B, Cin, H, W) -> (B, C, N*HW).  Row c carries the N input
    # channels of output-group c as N lane blocks of width HW, so the kernel
    # needs no gather / de-interleave and every slice is 128-lane aligned.
    xv = x.reshape(B, C, N * HW)

    # VMEM budget from the actual operand footprint (per-sample blocks):
    nb = jnp.dtype(g1f.dtype).itemsize
    est = (2 * (C * N * HW + C * HW) * 4                 # x + out, double-buffered
           + (2 * C * N2 * HW + 2 * C * HW) * nb         # gamma/beta, single-buffered
           + (C * 3 * N2 + C * (N2 + 3)) * 4             # packed scalar columns
           + (N2 + 4) * C * HW * 4)                      # live intermediates
    vmem_limit = int(min(max(2 * est, 16 * 1024 * 1024), 100 * 1024 * 1024))

    def _param_spec(shape):
        # Invariant parameters: constant index map + single buffering.
        return pl.BlockSpec(shape, lambda b: (0,) * len(shape),
                            pipeline_mode=pl.Buffered(1))

    out = pl.pallas_call(
        _make_kernel(C, N2, HW),
        out_shape=jax.ShapeDtypeStruct((B, C, HW), jnp.float32),
        grid_spec=pltpu.PrefetchScalarGridSpec(
            num_scalar_prefetch=0,
            grid=(B,),      # one sample per step: pipelining + v7x dual-TC sharding
            in_specs=[
                pl.BlockSpec((None, C, N * HW), lambda b: (b, 0, 0)),   # x view
                _param_spec((C, 3 * N2)),        # [w1_even | w1_odd | b1]
                _param_spec((C, N2 * HW)),       # gamma1 (group-blocked lanes)
                _param_spec((C, N2 * HW)),       # beta1
                _param_spec((C, N2 + 3)),        # [w2 | b2 | w3 | b3]
                _param_spec((C, HW)),            # gamma2
                _param_spec((C, HW)),            # beta2
            ],
            out_specs=pl.BlockSpec((None, C, HW), lambda b: (b, 0, 0)),
        ),
        compiler_params=pltpu.CompilerParams(
            dimension_semantics=("parallel",),
            vmem_limit_bytes=vmem_limit,
        ),
    )(xv, p1, g1f, be1f, p2, g2f, be2f)

    # TODO(synk): for realistic widths (Cin~1280, HW~4096) add an HW-tile grid
    # axis with a two-pass LayerNorm (accumulate per-sample sum/sumsq across HW
    # tiles in VMEM scratch, normalize in a second sweep) so the working set
    # fits v7x's 64 MiB VMEM and v5e's 16 MiB scoped default.
    return out.reshape(B, C, H, W)


def build_params(key, *, C, N, H, W):
    """Deterministic synthetic parameters in PyTorch-native layouts."""
    Cin = C * N
    Cmid = Cin // 2
    N2 = Cmid // C
    ks = jax.random.split(key, 10)
    w1 = jax.random.normal(ks[0], (Cmid, 2), jnp.float32) * 0.2    # (out, in/group)
    b1 = jax.random.normal(ks[1], (Cmid,), jnp.float32) * 0.1
    w2 = jax.random.normal(ks[2], (C, N2), jnp.float32) * 0.2
    b2 = jax.random.normal(ks[3], (C,), jnp.float32) * 0.1
    w3 = jax.random.normal(ks[4], (C,), jnp.float32) * 0.2         # depthwise
    b3 = jax.random.normal(ks[5], (C,), jnp.float32) * 0.1
    g1 = 1.0 + 0.1 * jax.random.normal(ks[6], (Cmid, H, W), jnp.float32)
    be1 = 0.1 * jax.random.normal(ks[7], (Cmid, H, W), jnp.float32)
    g2 = 1.0 + 0.1 * jax.random.normal(ks[8], (C, H, W), jnp.float32)
    be2 = 0.1 * jax.random.normal(ks[9], (C, H, W), jnp.float32)
    return (w1, b1, g1, be1, w2, b2, g2, be2, w3, b3)


def reference_forward(x, params, *, C, N, H, W):
    """Pure-JAX reference matching the PyTorch module exactly."""
    w1, b1, g1, be1, w2, b2, g2, be2, w3, b3 = params
    B = x.shape[0]
    HW = H * W
    Cin = C * N
    Cmid = Cin // 2
    N2 = Cmid // C

    def ln(h, g, be):
        mu = jnp.mean(h, axis=(1, 2), keepdims=True)
        var = jnp.mean((h - mu) ** 2, axis=(1, 2), keepdims=True)
        return (h - mu) / jnp.sqrt(var + EPS) * g[None] + be[None]

    h = x.reshape(B, Cin, HW)
    h = jnp.einsum('mi,bmis->bms', w1, h.reshape(B, Cmid, 2, HW)) + b1[None, :, None]
    h = ln(h, g1.reshape(Cmid, HW), be1.reshape(Cmid, HW))
    h = jax.nn.silu(h)
    h = jnp.einsum('cj,bcjs->bcs', w2, h.reshape(B, C, N2, HW)) + b2[None, :, None]
    h = ln(h, g2.reshape(C, HW), be2.reshape(C, HW))
    h = jax.nn.silu(h)
    y = w3[None, :, None] * h + b3[None, :, None]
    return y.reshape(B, C, H, W)


if __name__ == "__main__":
    # Small shapes: output_channel C=4, num_controlnets N=4, size=(16, 16), batch=2.
    C, N, H, W, B = 4, 4, 16, 16, 2
    key = jax.random.PRNGKey(0)
    kx, kp = jax.random.split(key)

    x = jax.random.normal(kx, (B, C * N, H, W), jnp.float32)
    params = build_params(kp, C=C, N=N, H=H, W=W)

    # Parameter folding done once, outside the per-call path (cache & reuse).
    prepared = prepare_params(params, C=C, N=N, H=H, W=W)

    run = jax.jit(functools.partial(controlnet_block, C=C, N=N, H=H, W=W))
    y = run(x, prepared)
    jax.block_until_ready(y)

    y_ref = reference_forward(x, params, C=C, N=N, H=H, W=W)
    assert y.shape == (B, C, H, W)
    assert jnp.allclose(y, y_ref, rtol=5e-3, atol=5e-3), "mismatch vs reference"

    print("KERNEL_OK")
</pallas_src>

<mosaic_0001>
module attributes {stable_mosaic.version = 11 : i64} {
  func.func @kernel(%arg0: i32, %arg1: memref<1x4x1024xf32, #tpu.memory_space<vmem>>, %arg2: memref<4x6xf32, #tpu.memory_space<vmem>>, %arg3: memref<4x512xf32, #tpu.memory_space<vmem>>, %arg4: memref<4x512xf32, #tpu.memory_space<vmem>>, %arg5: memref<4x5xf32, #tpu.memory_space<vmem>>, %arg6: memref<4x256xf32, #tpu.memory_space<vmem>>, %arg7: memref<4x256xf32, #tpu.memory_space<vmem>>, %arg8: memref<1x4x256xf32, #tpu.memory_space<vmem>>) attributes {dimension_semantics = [#tpu.dimension_semantics<parallel>], iteration_bounds = array<i64: 2>, scalar_prefetch = 0 : i64, scratch_operands = 0 : i64, tpu.core_type = #tpu.core_type<tc>, window_params = [{transform_indices = @transform_0, window_bounds = array<i64: 1, 4, 1024>}, {pipeline_mode = #tpu.pipeline_mode<synchronous>, transform_indices = @transform_1, window_bounds = array<i64: 4, 6>}, {pipeline_mode = #tpu.pipeline_mode<synchronous>, transform_indices = @transform_2, window_bounds = array<i64: 4, 512>}, {pipeline_mode = #tpu.pipeline_mode<synchronous>, transform_indices = @transform_3, window_bounds = array<i64: 4, 512>}, {pipeline_mode = #tpu.pipeline_mode<synchronous>, transform_indices = @transform_4, window_bounds = array<i64: 4, 5>}, {pipeline_mode = #tpu.pipeline_mode<synchronous>, transform_indices = @transform_5, window_bounds = array<i64: 4, 256>}, {pipeline_mode = #tpu.pipeline_mode<synchronous>, transform_indices = @transform_6, window_bounds = array<i64: 4, 256>}, {transform_indices = @transform_7, window_bounds = array<i64: 1, 4, 256>}]} {
    %c0 = arith.constant 0 : index
    %c0_0 = arith.constant 0 : index
    %0 = vector.load %arg2[%c0, %c0_0] : memref<4x6xf32, #tpu.memory_space<vmem>>, vector<4x6xf32>
    %c0_1 = arith.constant 0 : index
    %c0_2 = arith.constant 0 : index
    %1 = vector.load %arg5[%c0_1, %c0_2] : memref<4x5xf32, #tpu.memory_space<vmem>>, vector<4x5xf32>
    %c0_3 = arith.constant 0 : index
    %c0_4 = arith.constant 0 : index
    %c0_5 = arith.constant 0 : index
    %2 = vector.load %arg1[%c0_3, %c0_4, %c0_5] : memref<1x4x1024xf32, #tpu.memory_space<vmem>>, vector<1x4x256xf32>
    %3 = vector.shape_cast %2 : vector<1x4x256xf32> to vector<4x256xf32>
    %c0_6 = arith.constant 0 : index
    %c0_7 = arith.constant 0 : index
    %c256 = arith.constant 256 : index
    %4 = vector.load %arg1[%c0_6, %c0_7, %c256] : memref<1x4x1024xf32, #tpu.memory_space<vmem>>, vector<1x4x256xf32>
    %5 = vector.shape_cast %4 : vector<1x4x256xf32> to vector<4x256xf32>
    %6 = vector.extract_strided_slice %0 {offsets = [0, 0], sizes = [4, 1], strides = [1, 1]} : vector<4x6xf32> to vector<4x1xf32>
    %7 = vector.broadcast %6 : vector<4x1xf32> to vector<4x256xf32>
    %8 = arith.mulf %7, %3 : vector<4x256xf32>
    %9 = vector.extract_strided_slice %0 {offsets = [0, 2], sizes = [4, 1], strides = [1, 1]} : vector<4x6xf32> to vector<4x1xf32>
    %10 = vector.broadcast %9 : vector<4x1xf32> to vector<4x256xf32>
    %11 = arith.mulf %10, %5 : vector<4x256xf32>
    %12 = arith.addf %8, %11 : vector<4x256xf32>
    %13 = vector.extract_strided_slice %0 {offsets = [0, 4], sizes = [4, 1], strides = [1, 1]} : vector<4x6xf32> to vector<4x1xf32>
    %14 = vector.broadcast %13 : vector<4x1xf32> to vector<4x256xf32>
    %15 = arith.addf %12, %14 : vector<4x256xf32>
    %cst = arith.constant dense<0.000000e+00> : vector<256xf32>
    %16 = vector.multi_reduction <add>, %15, %cst [0] : vector<4x256xf32> to vector<256xf32>
    %17 = vector.shape_cast %16 : vector<256xf32> to vector<1x256xf32>
    %cst_8 = arith.constant dense<0.000000e+00> : vector<1xf32>
    %18 = vector.multi_reduction <add>, %17, %cst_8 [1] : vector<1x256xf32> to vector<1xf32>
    %19 = vector.shape_cast %18 : vector<1xf32> to vector<1x1xf32>
    %20 = arith.mulf %15, %15 : vector<4x256xf32>
    %cst_9 = arith.constant dense<0.000000e+00> : vector<256xf32>
    %21 = vector.multi_reduction <add>, %20, %cst_9 [0] : vector<4x256xf32> to vector<256xf32>
    %22 = vector.shape_cast %21 : vector<256xf32> to vector<1x256xf32>
    %cst_10 = arith.constant dense<0.000000e+00> : vector<1xf32>
    %23 = vector.multi_reduction <add>, %22, %cst_10 [1] : vector<1x256xf32> to vector<1xf32>
    %24 = vector.shape_cast %23 : vector<1xf32> to vector<1x1xf32>
    %c0_11 = arith.constant 0 : index
    %c0_12 = arith.constant 0 : index
    %c512 = arith.constant 512 : index
    %25 = vector.load %arg1[%c0_11, %c0_12, %c512] : memref<1x4x1024xf32, #tpu.memory_space<vmem>>, vector<1x4x256xf32>
    %26 = vector.shape_cast %25 : vector<1x4x256xf32> to vector<4x256xf32>
    %c0_13 = arith.constant 0 : index
    %c0_14 = arith.constant 0 : index
    %c768 = arith.constant 768 : index
    %27 = vector.load %arg1[%c0_13, %c0_14, %c768] : memref<1x4x1024xf32, #tpu.memory_space<vmem>>, vector<1x4x256xf32>
    %28 = vector.shape_cast %27 : vector<1x4x256xf32> to vector<4x256xf32>
    %29 = vector.extract_strided_slice %0 {offsets = [0, 1], sizes = [4, 1], strides = [1, 1]} : vector<4x6xf32> to vector<4x1xf32>
    %30 = vector.broadcast %29 : vector<4x1xf32> to vector<4x256xf32>
    %31 = arith.mulf %30, %26 : vector<4x256xf32>
    %32 = vector.extract_strided_slice %0 {offsets = [0, 3], sizes = [4, 1], strides = [1, 1]} : vector<4x6xf32> to vector<4x1xf32>
    %33 = vector.broadcast %32 : vector<4x1xf32> to vector<4x256xf32>
    %34 = arith.mulf %33, %28 : vector<4x256xf32>
    %35 = arith.addf %31, %34 : vector<4x256xf32>
    %36 = vector.extract_strided_slice %0 {offsets = [0, 5], sizes = [4, 1], strides = [1, 1]} : vector<4x6xf32> to vector<4x1xf32>
    %37 = vector.broadcast %36 : vector<4x1xf32> to vector<4x256xf32>
    %38 = arith.addf %35, %37 : vector<4x256xf32>
    %cst_15 = arith.constant dense<0.000000e+00> : vector<256xf32>
    %39 = vector.multi_reduction <add>, %38, %cst_15 [0] : vector<4x256xf32> to vector<256xf32>
    %40 = vector.shape_cast %39 : vector<256xf32> to vector<1x256xf32>
    %cst_16 = arith.constant dense<0.000000e+00> : vector<1xf32>
    %41 = vector.multi_reduction <add>, %40, %cst_16 [1] : vector<1x256xf32> to vector<1xf32>
    %42 = vector.shape_cast %41 : vector<1xf32> to vector<1x1xf32>
    %43 = arith.mulf %38, %38 : vector<4x256xf32>
    %cst_17 = arith.constant dense<0.000000e+00> : vector<256xf32>
    %44 = vector.multi_reduction <add>, %43, %cst_17 [0] : vector<4x256xf32> to vector<256xf32>
    %45 = vector.shape_cast %44 : vector<256xf32> to vector<1x256xf32>
    %cst_18 = arith.constant dense<0.000000e+00> : vector<1xf32>
    %46 = vector.multi_reduction <add>, %45, %cst_18 [1] : vector<1x256xf32> to vector<1xf32>
    %47 = vector.shape_cast %46 : vector<1xf32> to vector<1x1xf32>
    %48 = arith.addf %19, %42 : vector<1x1xf32>
    %49 = arith.addf %24, %47 : vector<1x1xf32>
    %cst_19 = arith.constant 4.8828125E-4 : f32
    %50 = vector.broadcast %cst_19 : f32 to vector<1x1xf32>
    %51 = arith.mulf %48, %50 : vector<1x1xf32>
    %cst_20 = arith.constant 4.8828125E-4 : f32
    %52 = vector.broadcast %cst_20 : f32 to vector<1x1xf32>
    %53 = arith.mulf %49, %52 : vector<1x1xf32>
    %54 = arith.mulf %51, %51 : vector<1x1xf32>
    %55 = arith.subf %53, %54 : vector<1x1xf32>
    %cst_21 = arith.constant 0.000000e+00 : f32
    %56 = vector.broadcast %cst_21 : f32 to vector<1x1xf32>
    %57 = arith.maximumf %55, %56 : vector<1x1xf32>
    %cst_22 = arith.constant 9.99999974E-6 : f32
    %58 = vector.broadcast %cst_22 : f32 to vector<1x1xf32>
    %59 = arith.addf %57, %58 : vector<1x1xf32>
    %60 = math.rsqrt %59 : vector<1x1xf32>
    %c0_23 = arith.constant 0 : index
    %c0_24 = arith.constant 0 : index
    %61 = vector.load %arg3[%c0_23, %c0_24] : memref<4x512xf32, #tpu.memory_space<vmem>>, vector<4x256xf32>
    %c0_25 = arith.constant 0 : index
    %c0_26 = arith.constant 0 : index
    %62 = vector.load %arg4[%c0_25, %c0_26] : memref<4x512xf32, #tpu.memory_space<vmem>>, vector<4x256xf32>
    %63 = vector.broadcast %51 : vector<1x1xf32> to vector<4x256xf32>
    %64 = arith.subf %15, %63 : vector<4x256xf32>
    %65 = vector.broadcast %60 : vector<1x1xf32> to vector<4x256xf32>
    %66 = arith.mulf %64, %65 : vector<4x256xf32>
    %67 = arith.mulf %66, %61 : vector<4x256xf32>
    %68 = arith.addf %67, %62 : vector<4x256xf32>
    %cst_27 = arith.constant 5.000000e-01 : f32
    %69 = vector.broadcast %cst_27 : f32 to vector<4x256xf32>
    %70 = arith.mulf %69, %68 : vector<4x256xf32>
    %71 = math.tanh %70 : vector<4x256xf32>
    %cst_28 = arith.constant 5.000000e-01 : f32
    %72 = vector.broadcast %cst_28 : f32 to vector<4x256xf32>
    %73 = arith.mulf %72, %71 : vector<4x256xf32>
    %cst_29 = arith.constant 5.000000e-01 : f32
    %74 = vector.broadcast %cst_29 : f32 to vector<4x256xf32>
    %75 = arith.addf %73, %74 : vector<4x256xf32>
    %76 = arith.mulf %68, %75 : vector<4x256xf32>
    %77 = vector.extract_strided_slice %1 {offsets = [0, 0], sizes = [4, 1], strides = [1, 1]} : vector<4x5xf32> to vector<4x1xf32>
    %78 = vector.broadcast %77 : vector<4x1xf32> to vector<4x256xf32>
    %79 = arith.mulf %78, %76 : vector<4x256xf32>
    %c0_30 = arith.constant 0 : index
    %c256_31 = arith.constant 256 : index
    %80 = vector.load %arg3[%c0_30, %c256_31] : memref<4x512xf32, #tpu.memory_space<vmem>>, vector<4x256xf32>
    %c0_32 = arith.constant 0 : index
    %c256_33 = arith.constant 256 : index
    %81 = vector.load %arg4[%c0_32, %c256_33] : memref<4x512xf32, #tpu.memory_space<vmem>>, vector<4x256xf32>
    %82 = vector.broadcast %51 : vector<1x1xf32> to vector<4x256xf32>
    %83 = arith.subf %38, %82 : vector<4x256xf32>
    %84 = vector.broadcast %60 : vector<1x1xf32> to vector<4x256xf32>
    %85 = arith.mulf %83, %84 : vector<4x256xf32>
    %86 = arith.mulf %85, %80 : vector<4x256xf32>
    %87 = arith.addf %86, %81 : vector<4x256xf32>
    %cst_34 = arith.constant 5.000000e-01 : f32
    %88 = vector.broadcast %cst_34 : f32 to vector<4x256xf32>
    %89 = arith.mulf %88, %87 : vector<4x256xf32>
    %90 = math.tanh %89 : vector<4x256xf32>
    %cst_35 = arith.constant 5.000000e-01 : f32
    %91 = vector.broadcast %cst_35 : f32 to vector<4x256xf32>
    %92 = arith.mulf %91, %90 : vector<4x256xf32>
    %cst_36 = arith.constant 5.000000e-01 : f32
    %93 = vector.broadcast %cst_36 : f32 to vector<4x256xf32>
    %94 = arith.addf %92, %93 : vector<4x256xf32>
    %95 = arith.mulf %87, %94 : vector<4x256xf32>
    %96 = vector.extract_strided_slice %1 {offsets = [0, 1], sizes = [4, 1], strides = [1, 1]} : vector<4x5xf32> to vector<4x1xf32>
    %97 = vector.broadcast %96 : vector<4x1xf32> to vector<4x256xf32>
    %98 = arith.mulf %97, %95 : vector<4x256xf32>
    %99 = arith.addf %79, %98 : vector<4x256xf32>
    %100 = vector.extract_strided_slice %1 {offsets = [0, 2], sizes = [4, 1], strides = [1, 1]} : vector<4x5xf32> to vector<4x1xf32>
    %101 = vector.broadcast %100 : vector<4x1xf32> to vector<4x256xf32>
    %102 = arith.addf %99, %101 : vector<4x256xf32>
    %cst_37 = arith.constant dense<0.000000e+00> : vector<256xf32>
    %103 = vector.multi_reduction <add>, %102, %cst_37 [0] : vector<4x256xf32> to vector<256xf32>
    %104 = vector.shape_cast %103 : vector<256xf32> to vector<1x256xf32>
    %cst_38 = arith.constant dense<0.000000e+00> : vector<1xf32>
    %105 = vector.multi_reduction <add>, %104, %cst_38 [1] : vector<1x256xf32> to vector<1xf32>
    %106 = vector.shape_cast %105 : vector<1xf32> to vector<1x1xf32>
    %107 = arith.mulf %102, %102 : vector<4x256xf32>
    %cst_39 = arith.constant dense<0.000000e+00> : vector<256xf32>
    %108 = vector.multi_reduction <add>, %107, %cst_39 [0] : vector<4x256xf32> to vector<256xf32>
    %109 = vector.shape_cast %108 : vector<256xf32> to vector<1x256xf32>
    %cst_40 = arith.constant dense<0.000000e+00> : vector<1xf32>
    %110 = vector.multi_reduction <add>, %109, %cst_40 [1] : vector<1x256xf32> to vector<1xf32>
    %111 = vector.shape_cast %110 : vector<1xf32> to vector<1x1xf32>
    %cst_41 = arith.constant 9.765625E-4 : f32
    %112 = vector.broadcast %cst_41 : f32 to vector<1x1xf32>
    %113 = arith.mulf %106, %112 : vector<1x1xf32>
    %cst_42 = arith.constant 9.765625E-4 : f32
    %114 = vector.broadcast %cst_42 : f32 to vector<1x1xf32>
    %115 = arith.mulf %111, %114 : vector<1x1xf32>
    %116 = arith.mulf %113, %113 : vector<1x1xf32>
    %117 = arith.subf %115, %116 : vector<1x1xf32>
    %cst_43 = arith.constant 0.000000e+00 : f32
    %118 = vector.broadcast %cst_43 : f32 to vector<1x1xf32>
    %119 = arith.maximumf %117, %118 : vector<1x1xf32>
    %cst_44 = arith.constant 9.99999974E-6 : f32
    %120 = vector.broadcast %cst_44 : f32 to vector<1x1xf32>
    %121 = arith.addf %119, %120 : vector<1x1xf32>
    %122 = math.rsqrt %121 : vector<1x1xf32>
    %123 = vector.broadcast %113 : vector<1x1xf32> to vector<4x256xf32>
    %124 = arith.subf %102, %123 : vector<4x256xf32>
    %125 = vector.broadcast %122 : vector<1x1xf32> to vector<4x256xf32>
    %126 = arith.mulf %124, %125 : vector<4x256xf32>
    %c0_45 = arith.constant 0 : index
    %c0_46 = arith.constant 0 : index
    %127 = vector.load %arg6[%c0_45, %c0_46] : memref<4x256xf32, #tpu.memory_space<vmem>>, vector<4x256xf32>
    %128 = arith.mulf %126, %127 : vector<4x256xf32>
    %c0_47 = arith.constant 0 : index
    %c0_48 = arith.constant 0 : index
    %129 = vector.load %arg7[%c0_47, %c0_48] : memref<4x256xf32, #tpu.memory_space<vmem>>, vector<4x256xf32>
    %130 = arith.addf %128, %129 : vector<4x256xf32>
    %cst_49 = arith.constant 5.000000e-01 : f32
    %131 = vector.broadcast %cst_49 : f32 to vector<4x256xf32>
    %132 = arith.mulf %131, %130 : vector<4x256xf32>
    %133 = math.tanh %132 : vector<4x256xf32>
    %cst_50 = arith.constant 5.000000e-01 : f32
    %134 = vector.broadcast %cst_50 : f32 to vector<4x256xf32>
    %135 = arith.mulf %134, %133 : vector<4x256xf32>
    %cst_51 = arith.constant 5.000000e-01 : f32
    %136 = vector.broadcast %cst_51 : f32 to vector<4x256xf32>
    %137 = arith.addf %135, %136 : vector<4x256xf32>
    %138 = arith.mulf %130, %137 : vector<4x256xf32>
    %139 = vector.extract_strided_slice %1 {offsets = [0, 3], sizes = [4, 1], strides = [1, 1]} : vector<4x5xf32> to vector<4x1xf32>
    %140 = vector.broadcast %139 : vector<4x1xf32> to vector<4x256xf32>
    %141 = arith.mulf %140, %138 : vector<4x256xf32>
    %142 = vector.extract_strided_slice %1 {offsets = [0, 4], sizes = [4, 1], strides = [1, 1]} : vector<4x5xf32> to vector<4x1xf32>
    %143 = vector.broadcast %142 : vector<4x1xf32> to vector<4x256xf32>
    %144 = arith.addf %141, %143 : vector<4x256xf32>
    %c0_52 = arith.constant 0 : index
    %c0_53 = arith.constant 0 : index
    %c0_54 = arith.constant 0 : index
    %145 = vector.load %arg8[%c0_52, %c0_53, %c0_54] : memref<1x4x256xf32, #tpu.memory_space<vmem>>, vector<1x4x256xf32>
    %146 = vector.shape_cast %145 : vector<1x4x256xf32> to vector<4x256xf32>
    %147 = vector.shape_cast %144 : vector<4x256xf32> to vector<1x4x256xf32>
    tpu.vector_store %arg8[%c0_52, %c0_53, %c0_54], %147 {strides = array<i32>} : memref<1x4x256xf32, #tpu.memory_space<vmem>>, vector<1x4x256xf32>,
    return
  }
  func.func @transform_0(%arg0: i32) -> (i32, i32, i32) {
    %c0_i32 = arith.constant 0 : i32
    %c0_i32_0 = arith.constant 0 : i32
    %c0_i32_1 = arith.constant 0 : i32
    return %arg0, %c0_i32, %c0_i32_0 : i32, i32, i32
  }
  func.func @transform_1(%arg0: i32) -> (i32, i32) {
    %c0_i32 = arith.constant 0 : i32
    %c0_i32_0 = arith.constant 0 : i32
    %c0_i32_1 = arith.constant 0 : i32
    return %c0_i32, %c0_i32_0 : i32, i32
  }
  func.func @transform_2(%arg0: i32) -> (i32, i32) {
    %c0_i32 = arith.constant 0 : i32
    %c0_i32_0 = arith.constant 0 : i32
    %c0_i32_1 = arith.constant 0 : i32
    return %c0_i32, %c0_i32_0 : i32, i32
  }
  func.func @transform_3(%arg0: i32) -> (i32, i32) {
    %c0_i32 = arith.constant 0 : i32
    %c0_i32_0 = arith.constant 0 : i32
    %c0_i32_1 = arith.constant 0 : i32
    return %c0_i32, %c0_i32_0 : i32, i32
  }
  func.func @transform_4(%arg0: i32) -> (i32, i32) {
    %c0_i32 = arith.constant 0 : i32
    %c0_i32_0 = arith.constant 0 : i32
    %c0_i32_1 = arith.constant 0 : i32
    return %c0_i32, %c0_i32_0 : i32, i32
  }
  func.func @transform_5(%arg0: i32) -> (i32, i32) {
    %c0_i32 = arith.constant 0 : i32
    %c0_i32_0 = arith.constant 0 : i32
    %c0_i32_1 = arith.constant 0 : i32
    return %c0_i32, %c0_i32_0 : i32, i32
  }
  func.func @transform_6(%arg0: i32) -> (i32, i32) {
    %c0_i32 = arith.constant 0 : i32
    %c0_i32_0 = arith.constant 0 : i32
    %c0_i32_1 = arith.constant 0 : i32
    return %c0_i32, %c0_i32_0 : i32, i32
  }
  func.func @transform_7(%arg0: i32) -> (i32, i32, i32) {
    %c0_i32 = arith.constant 0 : i32
    %c0_i32_0 = arith.constant 0 : i32
    %c0_i32_1 = arith.constant 0 : i32
    return %arg0, %c0_i32, %c0_i32_0 : i32, i32, i32
  }
}

</mosaic_0001>

<llo_original>
// kernel: controlnet_block.1
$region0: #{controlnet_block.1}
  #allocation0 [shape = 'u32[]', space=smem, size = 0x4, offset = 0x4, fixed_abs, tag = 'smem constant byte address 0x4 - core index']
  #allocation1 [shape = 'u32[72,128]{1,0:T(1,128)}', space=vmem, size = 0x9000, scoped, tag = 'internal scratch']
  %s0 = inlined_call_operand.vmem [shape: f32[2,4,1024], index: 0, kind: input, shape index: {}]
  %s1 = inlined_call_operand.vmem [shape: f32[4,6], index: 1, kind: input, shape index: {}]
  %s2 = inlined_call_operand.vmem [shape: f32[4,512], index: 2, kind: input, shape index: {}]
  %s3 = inlined_call_operand.vmem [shape: f32[4,512], index: 3, kind: input, shape index: {}]
  %s4 = inlined_call_operand.vmem [shape: f32[4,5], index: 4, kind: input, shape index: {}]
  %s5 = inlined_call_operand.vmem [shape: f32[4,256], index: 5, kind: input, shape index: {}]
  %s6 = inlined_call_operand.vmem [shape: f32[4,256], index: 6, kind: input, shape index: {}]
  %s7 = inlined_call_operand.vmem [shape: f32[2,4,256], index: 7, kind: output, shape index: {}]
  %s8 = sld [smem:[#allocation0]]
  $region61: #{controlnet_block.1} parent=0
    _
  %s10 = ssub.s32 1, %s8
  %s11 = scalar_select 0, %s10, %s8
  loop: start=0, step=1, limit=4
  $region2: #{controlnet_block.1} parent=0 // loop_pre_header
    _
  $region3: #{controlnet_block.1} parent=0 // loop_header
    %s13 = sphi 0, %s17
    %p14 = scmp.ge.s32.totalorder %s13, 4
    %s23 = sphi 0, %s25
    %s26 = sphi 0, %s23
    %s27 = sphi 0, %s26
    %s43 = sphi 0, %s27
    %s47 = sphi 0, %s47
    %s49 = sphi 0, %s47
    %s50 = sphi 0, %s49
    %s64 = sphi 0, %s50
    %s68 = sphi 0, %s68
    %s70 = sphi 0, %s68
    %s71 = sphi 0, %s70
    %s85 = sphi 0, %s71
    %s89 = sphi 0, %s89
    %s91 = sphi 0, %s89
    %s92 = sphi 0, %s91
    %s106 = sphi 0, %s92
    %s110 = sphi 0, %s110
    %s112 = sphi 0, %s110
    %s113 = sphi 0, %s112
    %s127 = sphi 0, %s113
    %s131 = sphi 0, %s131
    %s133 = sphi 0, %s131
    %s134 = sphi 0, %s133
    %s148 = sphi 0, %s134
    %s152 = sphi 0, %s152
    %s154 = sphi 0, %s152
    %s155 = sphi 0, %s154
    %s169 = sphi 0, %s155
    %s175 = sphi 0, %s177
    %s178 = sphi 0, %s175
    %s179 = sphi 0, %s178
    %s195 = sphi 0, %s179
  $region4: #{controlnet_block.1} parent=0 // loop_header_branch
    %16 = sbr.rel (%p14) target = $region8
  $region5: #{controlnet_block.1} parent=0 // loop_body
    %s18 = ssub.s32 %s13, 1
    %s19 = ssub.s32 %s13, 2
    %s20 = sadd.s32 %s13, 1
    %s21 = ssub.s32 %s13, %s20
    %p22 = scmp.eq.s32.totalorder %s21, 0
    %s24 = sadd.s32 %s23, 1
    %s25 = scalar_select %p22, %s23, %s24
    %p28 = pneg %p22
    %p29 = scmp.eq.s32.totalorder %s13, 1
    %p30 = por %p28, %p29
    %p31 = scmp.ne.s32.totalorder %s23, %s26
    %p32 = scmp.eq.s32.totalorder %s13, 0
    %p33 = por %p31, %p32
    %p34 = scmp.ne.s32.totalorder %s23, %s26
    %p35 = scmp.eq.s32.totalorder %s18, 1
    %p36 = por %p34, %p35
    %p37 = scmp.ne.s32.totalorder %s26, %s27
    %p38 = scmp.eq.s32.totalorder %s18, 0
    %p39 = por %p37, %p38
    %p40 = scmp.ne.s32.totalorder %s26, %s27
    %p41 = scmp.eq.s32.totalorder %s19, 1
    %p42 = por %p40, %p41
    %p44 = scmp.ne.s32.totalorder %s27, %s43
    %p45 = scmp.eq.s32.totalorder %s19, 0
    %p46 = por %p44, %p45
    %s48 = sadd.s32 %s47, 1
    %p51 = scmp.eq.s32.totalorder %s13, 1
    %p52 = scmp.ne.s32.totalorder %s47, %s49
    %p53 = scmp.eq.s32.totalorder %s13, 0
    %p54 = por %p52, %p53
    %p55 = scmp.ne.s32.totalorder %s47, %s49
    %p56 = scmp.eq.s32.totalorder %s18, 1
    %p57 = por %p55, %p56
    %p58 = scmp.ne.s32.totalorder %s49, %s50
    %p59 = scmp.eq.s32.totalorder %s18, 0
    %p60 = por %p58, %p59
    %p61 = scmp.ne.s32.totalorder %s49, %s50
    %p62 = scmp.eq.s32.totalorder %s19, 1
    %p63 = por %p61, %p62
    %p65 = scmp.ne.s32.totalorder %s50, %s64
    %p66 = scmp.eq.s32.totalorder %s19, 0
    %p67 = por %p65, %p66
    %s69 = sadd.s32 %s68, 1
    %p72 = scmp.eq.s32.totalorder %s13, 1
    %p73 = scmp.ne.s32.totalorder %s68, %s70
    %p74 = scmp.eq.s32.totalorder %s13, 0
    %p75 = por %p73, %p74
    %p76 = scmp.ne.s32.totalorder %s68, %s70
    %p77 = scmp.eq.s32.totalorder %s18, 1
    %p78 = por %p76, %p77
    %p79 = scmp.ne.s32.totalorder %s70, %s71
    %p80 = scmp.eq.s32.totalorder %s18, 0
    %p81 = por %p79, %p80
    %p82 = scmp.ne.s32.totalorder %s70, %s71
    %p83 = scmp.eq.s32.totalorder %s19, 1
    %p84 = por %p82, %p83
    %p86 = scmp.ne.s32.totalorder %s71, %s85
    %p87 = scmp.eq.s32.totalorder %s19, 0
    %p88 = por %p86, %p87
    %s90 = sadd.s32 %s89, 1
    %p93 = scmp.eq.s32.totalorder %s13, 1
    %p94 = scmp.ne.s32.totalorder %s89, %s91
    %p95 = scmp.eq.s32.totalorder %s13, 0
    %p96 = por %p94, %p95
    %p97 = scmp.ne.s32.totalorder %s89, %s91
    %p98 = scmp.eq.s32.totalorder %s18, 1
    %p99 = por %p97, %p98
    %p100 = scmp.ne.s32.totalorder %s91, %s92
    %p101 = scmp.eq.s32.totalorder %s18, 0
    %p102 = por %p100, %p101
    %p103 = scmp.ne.s32.totalorder %s91, %s92
    %p104 = scmp.eq.s32.totalorder %s19, 1
    %p105 = por %p103, %p104
    %p107 = scmp.ne.s32.totalorder %s92, %s106
    %p108 = scmp.eq.s32.totalorder %s19, 0
    %p109 = por %p107, %p108
    %s111 = sadd.s32 %s110, 1
    %p114 = scmp.eq.s32.totalorder %s13, 1
    %p115 = scmp.ne.s32.totalorder %s110, %s112
    %p116 = scmp.eq.s32.totalorder %s13, 0
    %p117 = por %p115, %p116
    %p118 = scmp.ne.s32.totalorder %s110, %s112
    %p119 = scmp.eq.s32.totalorder %s18, 1
    %p120 = por %p118, %p119
    %p121 = scmp.ne.s32.totalorder %s112, %s113
    %p122 = scmp.eq.s32.totalorder %s18, 0
    %p123 = por %p121, %p122
    %p124 = scmp.ne.s32.totalorder %s112, %s113
    %p125 = scmp.eq.s32.totalorder %s19, 1
    %p126 = por %p124, %p125
    %p128 = scmp.ne.s32.totalorder %s113, %s127
    %p129 = scmp.eq.s32.totalorder %s19, 0
    %p130 = por %p128, %p129
    %s132 = sadd.s32 %s131, 1
    %p135 = scmp.eq.s32.totalorder %s13, 1
    %p136 = scmp.ne.s32.totalorder %s131, %s133
    %p137 = scmp.eq.s32.totalorder %s13, 0
    %p138 = por %p136, %p137
    %p139 = scmp.ne.s32.totalorder %s131, %s133
    %p140 = scmp.eq.s32.totalorder %s18, 1
    %p141 = por %p139, %p140
    %p142 = scmp.ne.s32.totalorder %s133, %s134
    %p143 = scmp.eq.s32.totalorder %s18, 0
    %p144 = por %p142, %p143
    %p145 = scmp.ne.s32.totalorder %s133, %s134
    %p146 = scmp.eq.s32.totalorder %s19, 1
    %p147 = por %p145, %p146
    %p149 = scmp.ne.s32.totalorder %s134, %s148
    %p150 = scmp.eq.s32.totalorder %s19, 0
    %p151 = por %p149, %p150
    %s153 = sadd.s32 %s152, 1
    %p156 = scmp.eq.s32.totalorder %s13, 1
    %p157 = scmp.ne.s32.totalorder %s152, %s154
    %p158 = scmp.eq.s32.totalorder %s13, 0
    %p159 = por %p157, %p158
    %p160 = scmp.ne.s32.totalorder %s152, %s154
    %p161 = scmp.eq.s32.totalorder %s18, 1
    %p162 = por %p160, %p161
    %p163 = scmp.ne.s32.totalorder %s154, %s155
    %p164 = scmp.eq.s32.totalorder %s18, 0
    %p165 = por %p163, %p164
    %p166 = scmp.ne.s32.totalorder %s154, %s155
    %p167 = scmp.eq.s32.totalorder %s19, 1
    %p168 = por %p166, %p167
    %p170 = scmp.ne.s32.totalorder %s155, %s169
    %p171 = scmp.eq.s32.totalorder %s19, 0
    %p172 = por %p170, %p171
    %s173 = ssub.s32 %s13, %s20
    %p174 = scmp.eq.s32.totalorder %s173, 0
    %s176 = sadd.s32 %s175, 1
    %s177 = scalar_select %p174, %s175, %s176
    %p180 = pneg %p174
    %p181 = scmp.eq.s32.totalorder %s13, 1
    %p182 = por %p180, %p181
    %p183 = scmp.ne.s32.totalorder %s175, %s178
    %p184 = scmp.eq.s32.totalorder %s13, 0
    %p185 = por %p183, %p184
    %p186 = scmp.ne.s32.totalorder %s175, %s178
    %p187 = scmp.eq.s32.totalorder %s18, 1
    %p188 = por %p186, %p187
    %p189 = scmp.ne.s32.totalorder %s178, %s179
    %p190 = scmp.eq.s32.totalorder %s18, 0
    %p191 = por %p189, %p190
    %p192 = scmp.ne.s32.totalorder %s178, %s179
    %p193 = scmp.eq.s32.totalorder %s19, 1
    %p194 = por %p192, %p193
    %p196 = scmp.ne.s32.totalorder %s179, %s195
    %p197 = scmp.eq.s32.totalorder %s19, 0
    %p198 = por %p196, %p197
    %p199 = scmp.le.s32.totalorder 1, %s13
    %p200 = scmp.lt.s32.totalorder %s13, 3
    %p201 = pnand %p199, %p200
    %p202 = pneg %p201
    // Predicated region
    $region9: #{controlnet_block.1} parent=5 // pred_check
      _
    $region10: #{controlnet_block.1} parent=5 // pred_check_branch
      %204 = sbr.rel (%p201) target = $region12
    $region11: #{controlnet_block.1} parent=5 // pred_region
      %s205 = ssub.s32 %s13, 1
      // Predicated region
      $region13: #{controlnet_block.1} parent=11 // pred_check
        %p206 = pneg %p60
      $region14: #{controlnet_block.1} parent=11 // pred_check_branch
        %208 = sbr.rel (%p206) target = $region16
      $region15: #{controlnet_block.1} parent=11 // pred_region
        _
      $region16: #{controlnet_block.1} parent=11 // pred_fallthru
        _
      // Predicated region
      $region17: #{controlnet_block.1} parent=11 // pred_check
        %p209 = pneg %p81
      $region18: #{controlnet_block.1} parent=11 // pred_check_branch
        %211 = sbr.rel (%p209) target = $region20
      $region19: #{controlnet_block.1} parent=11 // pred_region
        _
      $region20: #{controlnet_block.1} parent=11 // pred_fallthru
        _
      // Predicated region
      $region21: #{controlnet_block.1} parent=11 // pred_check
        %p212 = pneg %p102
      $region22: #{controlnet_block.1} parent=11 // pred_check_branch
        %214 = sbr.rel (%p212) target = $region24
      $region23: #{controlnet_block.1} parent=11 // pred_region
        _
      $region24: #{controlnet_block.1} parent=11 // pred_fallthru
        _
      // Predicated region
      $region25: #{controlnet_block.1} parent=11 // pred_check
        %p215 = pneg %p123
      $region26: #{controlnet_block.1} parent=11 // pred_check_branch
        %217 = sbr.rel (%p215) target = $region28
      $region27: #{controlnet_block.1} parent=11 // pred_region
        _
      $region28: #{controlnet_block.1} parent=11 // pred_fallthru
        _
      // Predicated region
      $region29: #{controlnet_block.1} parent=11 // pred_check
        %p218 = pneg %p144
      $region30: #{controlnet_block.1} parent=11 // pred_check_branch
        %220 = sbr.rel (%p218) target = $region32
      $region31: #{controlnet_block.1} parent=11 // pred_region
        _
      $region32: #{controlnet_block.1} parent=11 // pred_fallthru
        _
      // Predicated region
      $region33: #{controlnet_block.1} parent=11 // pred_check
        %p221 = pneg %p165
      $region34: #{controlnet_block.1} parent=11 // pred_check_branch
        %223 = sbr.rel (%p221) target = $region36
      $region35: #{controlnet_block.1} parent=11 // pred_region
        _
      $region36: #{controlnet_block.1} parent=11 // pred_fallthru
        _
    $region12: #{controlnet_block.1} parent=5 // pred_fallthru
      _
    %p224 = scmp.lt.s32.totalorder %s13, 2
    // Predicated region
    $region37: #{controlnet_block.1} parent=5 // pred_check
      %p225 = pneg %p224
    $region38: #{controlnet_block.1} parent=5 // pred_check_branch
      %227 = sbr.rel (%p225) target = $region40
    $region39: #{controlnet_block.1} parent=5 // pred_region
      // Predicated region
      $region41: #{controlnet_block.1} parent=39 // pred_check
        %p228 = pneg %p33
      $region42: #{controlnet_block.1} parent=39 // pred_check_branch
        %230 = sbr.rel (%p228) target = $region44
      $region43: #{controlnet_block.1} parent=39 // pred_region
        %p231 = scmp.lt.s32.totalorder %s13, 1
        %s232 = scalar_select %p231, %s13, 1
        %s233 = smul.addr %s232, 8
        %s234 = smul.addr %s233, 4
        %s235 = scalar_lea.vmem %s0, %s234
      $region44: #{controlnet_block.1} parent=39 // pred_fallthru
        _
    $region40: #{controlnet_block.1} parent=5 // pred_fallthru
      _
    %p236 = scmp.le.s32.totalorder 1, %s13
    %p237 = scmp.lt.s32.totalorder %s13, 3
    %p238 = pnand %p236, %p237
    %p239 = pneg %p238
    // Predicated region
    $region45: #{controlnet_block.1} parent=5 // pred_check
      _
    $region46: #{controlnet_block.1} parent=5 // pred_check_branch
      %241 = sbr.rel (%p238) target = $region48
    $region47: #{controlnet_block.1} parent=5 // pred_region
      %s242 = ssub.s32 %s13, 1
      %p243 = scmp.lt.s32.totalorder %s18, 1
      %s244 = scalar_select %p243, %s18, 1
      %s245 = smul.addr %s244, 8
      %s246 = smul.addr %s245, 4
      %s247 = scalar_lea.vmem %s0, %s246
      %p248 = pneg %p39
      %p249 = pneg %p36
      %p250 = pneg %p60
      %p251 = pneg %p57
      %p252 = pneg %p81
      %p253 = pneg %p78
      %p254 = pneg %p102
      %p255 = pneg %p99
      %p256 = pneg %p123
      %p257 = pneg %p120
      %p258 = pneg %p144
      %p259 = pneg %p141
      %p260 = pneg %p165
      %p261 = pneg %p162
      %p262 = pneg %p191
      %p263 = pneg %p188
      %p264 = scmp.lt.s32.totalorder %s18, 1
      %s265 = scalar_select %p264, %s18, 1
      %s266 = smul.addr %s265, 2
      %s267 = smul.addr %s266, 4
      %s268 = scalar_lea.vmem %s7, %s267
      %p269 = scmp.lt.s32.totalorder %s18, 1
      %s270 = scalar_select %p269, %s18, 1
      %s271 = smul.addr %s270, 8
      %s272 = smul.addr %s271, 4
      %s273 = scalar_lea.vmem %s0, %s272
      %p274 = scmp.lt.s32.totalorder %s18, 1
      %s275 = scalar_select %p274, %s18, 1
      %s276 = smul.addr %s275, 2
      %s277 = smul.addr %s276, 4
      %s278 = scalar_lea.vmem %s7, %s277
      %v279 = vld [vmem:[%s1] sm:$0xf]
      %v280 = vld [vmem:[%s4] sm:$0xf]
      %v281 = vld [vmem:[%s273] sm:$0xff]
      %v282 = vld [vmem:[%s273 + $0x8] sm:$0xff]
      %284 = vset.pattern.permute.xlu0 0
      %285 = vperm.xlu0 %284, %v279
      %v286 = vpop.permute.xlu0 %285
      %289 = vst [vmem:[#allocation1] ss:$2 sm:$0xff] %v281
      %v290 = vld.sshfl [vmem:[#allocation1] sm:$0xff pattern:$0x75316420]
      %v291 = vld.sshfl [vmem:[#allocation1 + $0x8] sm:$0xff pattern:$0x75316420]
      %v294 = vmul.f32 %v286, %v290
      %v295 = vmul.f32 %v286, %v291
      %296 = vset.pattern.permute.xlu0 2
      %297 = vperm.xlu0 %296, %v279
      %v298 = vpop.permute.xlu0 %297
      %301 = vst [vmem:[#allocation1] ss:$2 sm:$0xff] %v282
      %v302 = vld.sshfl [vmem:[#allocation1] sm:$0xff pattern:$0x75316420]
      %v303 = vld.sshfl [vmem:[#allocation1 + $0x8] sm:$0xff pattern:$0x75316420]
      %v306 = vmul.f32 %v298, %v302
      %v307 = vmul.f32 %v298, %v303
      %v308 = vadd.f32 %v294, %v306
      %v309 = vadd.f32 %v295, %v307
      %310 = vset.pattern.permute.xlu0 4
      %311 = vperm.xlu0 %310, %v279
      %v312 = vpop.permute.xlu0 %311
      %v314 = vadd.f32 %v308, %v312
      %v315 = vadd.f32 %v309, %v312
      %vm316 = vcmask 1043456
      %v317 = vsel %vm316, %v314, 0.0
      %v318 = vrot.slane %v317, 4
      %v319 = vadd.f32 %v317, %v318
      %v320 = vrot.slane %v319, 2
      %v321 = vadd.f32 %v319, %v320
      %v322 = vrot.slane %v321, 1
      %v323 = vadd.f32 %v321, %v322
      %v324 = vsel %vm316, %v315, 0.0
      %v325 = vrot.slane %v324, 4
      %v326 = vadd.f32 %v324, %v325
      %v327 = vrot.slane %v326, 2
      %v328 = vadd.f32 %v326, %v327
      %v329 = vrot.slane %v328, 1
      %v330 = vadd.f32 %v328, %v329
      %v331 = vadd.f32 %v323, %v330
      %332 = vadd.xlane.f32.xlu0 %v331
      %v333 = vpop.xlane.xlu0 %332
      %v334 = vmul.f32 %v314, %v314
      %v335 = vmul.f32 %v315, %v315
      %v336 = vsel %vm316, %v334, 0.0
      %v337 = vrot.slane %v336, 4
      %v338 = vadd.f32 %v336, %v337
      %v339 = vrot.slane %v338, 2
      %v340 = vadd.f32 %v338, %v339
      %v341 = vrot.slane %v340, 1
      %v342 = vadd.f32 %v340, %v341
      %v343 = vsel %vm316, %v335, 0.0
      %v344 = vrot.slane %v343, 4
      %v345 = vadd.f32 %v343, %v344
      %v346 = vrot.slane %v345, 2
      %v347 = vadd.f32 %v345, %v346
      %v348 = vrot.slane %v347, 1
      %v349 = vadd.f32 %v347, %v348
      %v350 = vadd.f32 %v342, %v349
      %351 = vadd.xlane.f32.xlu0 %v350
      %v352 = vpop.xlane.xlu0 %351
      %v353 = vld [vmem:[%s273 + $0x10] sm:$0xff]
      %v354 = vld [vmem:[%s273 + $0x18] sm:$0xff]
      %355 = vset.pattern.permute.xlu0 1
      %356 = vperm.xlu0 %355, %v279
      %v357 = vpop.permute.xlu0 %356
      %360 = vst [vmem:[#allocation1] ss:$2 sm:$0xff] %v353
      %v361 = vld.sshfl [vmem:[#allocation1] sm:$0xff pattern:$0x75316420]
      %v362 = vld.sshfl [vmem:[#allocation1 + $0x8] sm:$0xff pattern:$0x75316420]
      %v365 = vmul.f32 %v357, %v361
      %v366 = vmul.f32 %v357, %v362
      %367 = vset.pattern.permute.xlu0 3
      %368 = vperm.xlu0 %367, %v279
      %v369 = vpop.permute.xlu0 %368
      %372 = vst [vmem:[#allocation1] ss:$2 sm:$0xff] %v354
      %v373 = vld.sshfl [vmem:[#allocation1] sm:$0xff pattern:$0x75316420]
      %v374 = vld.sshfl [vmem:[#allocation1 + $0x8] sm:$0xff pattern:$0x75316420]
      %v377 = vmul.f32 %v369, %v373
      %v378 = vmul.f32 %v369, %v374
      %v379 = vadd.f32 %v365, %v377
      %v380 = vadd.f32 %v366, %v378
      %381 = vset.pattern.permute.xlu0 5
      %382 = vperm.xlu0 %381, %v279
      %v383 = vpop.permute.xlu0 %382
      %v385 = vadd.f32 %v379, %v383
      %v386 = vadd.f32 %v380, %v383
      %v387 = vsel %vm316, %v385, 0.0
      %v388 = vrot.slane %v387, 4
      %v389 = vadd.f32 %v387, %v388
      %v390 = vrot.slane %v389, 2
      %v391 = vadd.f32 %v389, %v390
      %v392 = vrot.slane %v391, 1
      %v393 = vadd.f32 %v391, %v392
      %v394 = vsel %vm316, %v386, 0.0
      %v395 = vrot.slane %v394, 4
      %v396 = vadd.f32 %v394, %v395
      %v397 = vrot.slane %v396, 2
      %v398 = vadd.f32 %v396, %v397
      %v399 = vrot.slane %v398, 1
      %v400 = vadd.f32 %v398, %v399
      %v401 = vadd.f32 %v393, %v400
      %402 = vadd.xlane.f32.xlu0 %v401
      %v403 = vpop.xlane.xlu0 %402
      %v404 = vmul.f32 %v385, %v385
      %v405 = vmul.f32 %v386, %v386
      %v406 = vsel %vm316, %v404, 0.0
      %v407 = vrot.slane %v406, 4
      %v408 = vadd.f32 %v406, %v407
      %v409 = vrot.slane %v408, 2
      %v410 = vadd.f32 %v408, %v409
      %v411 = vrot.slane %v410, 1
      %v412 = vadd.f32 %v410, %v411
      %v413 = vsel %vm316, %v405, 0.0
      %v414 = vrot.slane %v413, 4
      %v415 = vadd.f32 %v413, %v414
      %v416 = vrot.slane %v415, 2
      %v417 = vadd.f32 %v415, %v416
      %v418 = vrot.slane %v417, 1
      %v419 = vadd.f32 %v417, %v418
      %v420 = vadd.f32 %v412, %v419
      %421 = vadd.xlane.f32.xlu0 %v420
      %v422 = vpop.xlane.xlu0 %421
      %v423 = vadd.f32 %v333, %v403
      %v424 = vadd.f32 %v352, %v422
      %v425 = vmul.f32 %v423, 0.00048828125
      %v426 = vmul.f32 %v424, 0.00048828125
      %v427 = vmul.f32 %v425, %v425
      %v428 = vsub.f32 %v426, %v427
      %v429 = vmax.f32 %v428, 0.0
      %v430 = vadd.f32 %v429, 1e-05
      %v431 = vrsqrt.pop %v430
      %v432 = vmul.f32 %v431, %v430
      %v433 = vmul.f32 %v432, %v431
      %v434 = vmul.f32 0.5, %v433
      %v435 = vsub.f32 1.5, %v434
      %v436 = vmul.f32 %v431, %v435
      %vm437 = vweird.f32 %v430
      %vm438 = vweird.f32 %v431
      %vm439 = vmor %vm437, %vm438
      %v440 = vsel %vm439, %v431, %v436
      %v441 = vld [vmem:[%s2] sm:$0xff]
      %v442 = vld [vmem:[%s3] sm:$0xff]
      %v443 = vsub.f32 %v314, %v425
      %v444 = vsub.f32 %v315, %v425
      %v445 = vmul.f32 %v443, %v440
      %v446 = vmul.f32 %v444, %v440
      %448 = vst [vmem:[#allocation1] ss:$2 sm:$0xff] %v441
      %v449 = vld.sshfl [vmem:[#allocation1] sm:$0xff pattern:$0x75316420]
      %v450 = vld.sshfl [vmem:[#allocation1 + $0x8] sm:$0xff pattern:$0x75316420]
      %v453 = vmul.f32 %v445, %v449
      %v454 = vmul.f32 %v446, %v450
      %456 = vst [vmem:[#allocation1] ss:$2 sm:$0xff] %v442
      %v457 = vld.sshfl [vmem:[#allocation1] sm:$0xff pattern:$0x75316420]
      %v458 = vld.sshfl [vmem:[#allocation1 + $0x8] sm:$0xff pattern:$0x75316420]
      %v461 = vadd.f32 %v453, %v457
      %v462 = vadd.f32 %v454, %v458
      %v463 = vmul.f32 %v461, 0.5
      %v464 = vmul.f32 %v462, 0.5
      %v465 = vtanh.pop %v463
      %v466 = vtanh.pop %v464
      %v467 = vmul.f32 %v465, 0.5
      %v468 = vmul.f32 %v466, 0.5
      %v469 = vadd.f32 %v467, 0.5
      %v470 = vadd.f32 %v468, 0.5
      %v471 = vmul.f32 %v461, %v469
      %v472 = vmul.f32 %v462, %v470
      %474 = vset.pattern.permute.xlu0 0
      %475 = vperm.xlu0 %474, %v280
      %v476 = vpop.permute.xlu0 %475
      %v478 = vmul.f32 %v476, %v471
      %v479 = vmul.f32 %v476, %v472
      %v480 = vld [vmem:[%s2 + $0x8] sm:$0xff]
      %v481 = vld [vmem:[%s3 + $0x8] sm:$0xff]
      %v482 = vsub.f32 %v385, %v425
      %v483 = vsub.f32 %v386, %v425
      %v484 = vmul.f32 %v482, %v440
      %v485 = vmul.f32 %v483, %v440
      %487 = vst [vmem:[#allocation1] ss:$2 sm:$0xff] %v480
      %v488 = vld.sshfl [vmem:[#allocation1] sm:$0xff pattern:$0x75316420]
      %v489 = vld.sshfl [vmem:[#allocation1 + $0x8] sm:$0xff pattern:$0x75316420]
      %v492 = vmul.f32 %v484, %v488
      %v493 = vmul.f32 %v485, %v489
      %495 = vst [vmem:[#allocation1] ss:$2 sm:$0xff] %v481
      %v496 = vld.sshfl [vmem:[#allocation1] sm:$0xff pattern:$0x75316420]
      %v497 = vld.sshfl [vmem:[#allocation1 + $0x8] sm:$0xff pattern:$0x75316420]
      %v500 = vadd.f32 %v492, %v496
      %v501 = vadd.f32 %v493, %v497
      %v502 = vmul.f32 %v500, 0.5
      %v503 = vmul.f32 %v501, 0.5
      %v504 = vtanh.pop %v502
      %v505 = vtanh.pop %v503
      %v506 = vmul.f32 %v504, 0.5
      %v507 = vmul.f32 %v505, 0.5
      %v508 = vadd.f32 %v506, 0.5
      %v509 = vadd.f32 %v507, 0.5
      %v510 = vmul.f32 %v500, %v508
      %v511 = vmul.f32 %v501, %v509
      %512 = vset.pattern.permute.xlu0 1
      %513 = vperm.xlu0 %512, %v280
      %v514 = vpop.permute.xlu0 %513
      %v516 = vmul.f32 %v514, %v510
      %v517 = vmul.f32 %v514, %v511
      %v518 = vadd.f32 %v478, %v516
      %v519 = vadd.f32 %v479, %v517
      %520 = vset.pattern.permute.xlu0 2
      %521 = vperm.xlu0 %520, %v280
      %v522 = vpop.permute.xlu0 %521
      %v524 = vadd.f32 %v518, %v522
      %v525 = vadd.f32 %v519, %v522
      %v526 = vsel %vm316, %v524, 0.0
      %v527 = vrot.slane %v526, 4
      %v528 = vadd.f32 %v526, %v527
      %v529 = vrot.slane %v528, 2
      %v530 = vadd.f32 %v528, %v529
      %v531 = vrot.slane %v530, 1
      %v532 = vadd.f32 %v530, %v531
      %v533 = vsel %vm316, %v525, 0.0
      %v534 = vrot.slane %v533, 4
      %v535 = vadd.f32 %v533, %v534
      %v536 = vrot.slane %v535, 2
      %v537 = vadd.f32 %v535, %v536
      %v538 = vrot.slane %v537, 1
      %v539 = vadd.f32 %v537, %v538
      %v540 = vadd.f32 %v532, %v539
      %541 = vadd.xlane.f32.xlu0 %v540
      %v542 = vpop.xlane.xlu0 %541
      %v543 = vmul.f32 %v524, %v524
      %v544 = vmul.f32 %v525, %v525
      %v545 = vsel %vm316, %v543, 0.0
      %v546 = vrot.slane %v545, 4
      %v547 = vadd.f32 %v545, %v546
      %v548 = vrot.slane %v547, 2
      %v549 = vadd.f32 %v547, %v548
      %v550 = vrot.slane %v549, 1
      %v551 = vadd.f32 %v549, %v550
      %v552 = vsel %vm316, %v544, 0.0
      %v553 = vrot.slane %v552, 4
      %v554 = vadd.f32 %v552, %v553
      %v555 = vrot.slane %v554, 2
      %v556 = vadd.f32 %v554, %v555
      %v557 = vrot.slane %v556, 1
      %v558 = vadd.f32 %v556, %v557
      %v559 = vadd.f32 %v551, %v558
      %560 = vadd.xlane.f32.xlu0 %v559
      %v561 = vpop.xlane.xlu0 %560
      %v562 = vmul.f32 %v542, 0.0009765625
      %v563 = vmul.f32 %v561, 0.0009765625
      %v564 = vmul.f32 %v562, %v562
      %v565 = vsub.f32 %v563, %v564
      %v566 = vmax.f32 %v565, 0.0
      %v567 = vadd.f32 %v566, 1e-05
      %v568 = vrsqrt.pop %v567
      %v569 = vmul.f32 %v568, %v567
      %v570 = vmul.f32 %v569, %v568
      %v571 = vmul.f32 0.5, %v570
      %v572 = vsub.f32 1.5, %v571
      %v573 = vmul.f32 %v568, %v572
      %vm574 = vweird.f32 %v567
      %vm575 = vweird.f32 %v568
      %vm576 = vmor %vm574, %vm575
      %v577 = vsel %vm576, %v568, %v573
      %v578 = vsub.f32 %v524, %v562
      %v579 = vsub.f32 %v525, %v562
      %v580 = vmul.f32 %v578, %v577
      %v581 = vmul.f32 %v579, %v577
      %v582 = vld [vmem:[%s5] sm:$0xff]
      %584 = vst [vmem:[#allocation1] ss:$2 sm:$0xff] %v582
      %v585 = vld.sshfl [vmem:[#allocation1] sm:$0xff pattern:$0x75316420]
      %v586 = vld.sshfl [vmem:[#allocation1 + $0x8] sm:$0xff pattern:$0x75316420]
      %v589 = vmul.f32 %v580, %v585
      %v590 = vmul.f32 %v581, %v586
      %v591 = vld [vmem:[%s6] sm:$0xff]
      %593 = vst [vmem:[#allocation1] ss:$2 sm:$0xff] %v591
      %v594 = vld.sshfl [vmem:[#allocation1] sm:$0xff pattern:$0x75316420]
      %v595 = vld.sshfl [vmem:[#allocation1 + $0x8] sm:$0xff pattern:$0x75316420]
      %v598 = vadd.f32 %v589, %v594
      %v599 = vadd.f32 %v590, %v595
      %v600 = vmul.f32 %v598, 0.5
      %v601 = vmul.f32 %v599, 0.5
      %v602 = vtanh.pop %v600
      %v603 = vtanh.pop %v601
      %v604 = vmul.f32 %v602, 0.5
      %v605 = vmul.f32 %v603, 0.5
      %v606 = vadd.f32 %v604, 0.5
      %v607 = vadd.f32 %v605, 0.5
      %v608 = vmul.f32 %v598, %v606
      %v609 = vmul.f32 %v599, %v607
      %610 = vset.pattern.permute.xlu0 3
      %611 = vperm.xlu0 %610, %v280
      %v612 = vpop.permute.xlu0 %611
      %v614 = vmul.f32 %v612, %v608
      %v615 = vmul.f32 %v612, %v609
      %616 = vset.pattern.permute.xlu0 4
      %617 = vperm.xlu0 %616, %v280
      %v618 = vpop.permute.xlu0 %617
      %v620 = vadd.f32 %v614, %v618
      %v621 = vadd.f32 %v615, %v618
      %v624 = vrot.slane %v621, 4
      %v625 = vsel %vm316, %v620, %v624
      %627 = vst [vmem:[%s278] sm:$0xff] %v625
      %p628 = scmp.lt.s32.totalorder %s18, 1
      %s629 = scalar_select %p628, %s18, 1
      %s630 = smul.addr %s629, 2
      %s631 = smul.addr %s630, 4
      %s632 = scalar_lea.vmem %s7, %s631
      // Predicated region
      $region49: #{controlnet_block.1} parent=47 // pred_check
        %p633 = pneg %p188
      $region50: #{controlnet_block.1} parent=47 // pred_check_branch
        %635 = sbr.rel (%p633) target = $region52
      $region51: #{controlnet_block.1} parent=47 // pred_region
        _
      $region52: #{controlnet_block.1} parent=47 // pred_fallthru
        _
    $region48: #{controlnet_block.1} parent=5 // pred_fallthru
      _
    %p636 = scmp.le.s32.totalorder 2, %s13
    // Predicated region
    $region53: #{controlnet_block.1} parent=5 // pred_check
      %p637 = pneg %p636
    $region54: #{controlnet_block.1} parent=5 // pred_check_branch
      %639 = sbr.rel (%p637) target = $region56
    $region55: #{controlnet_block.1} parent=5 // pred_region
      %s640 = ssub.s32 %s13, 2
      // Predicated region
      $region57: #{controlnet_block.1} parent=55 // pred_check
        %p641 = pneg %p194
      $region58: #{controlnet_block.1} parent=55 // pred_check_branch
        %643 = sbr.rel (%p641) target = $region60
      $region59: #{controlnet_block.1} parent=55 // pred_region
        %p644 = scmp.lt.s32.totalorder %s19, 1
        %s645 = scalar_select %p644, %s19, 1
        %s646 = smul.addr %s645, 2
        %s647 = smul.addr %s646, 4
        %s648 = scalar_lea.vmem %s7, %s647
      $region60: #{controlnet_block.1} parent=55 // pred_fallthru
        _
    $region56: #{controlnet_block.1} parent=5 // pred_fallthru
      _
  $region6: #{controlnet_block.1} parent=0 // loop_footer
    %s17 = sadd.s32 1, %s13
  $region7: #{controlnet_block.1} parent=0 // loop_footer_branch
    %12 = sbr.rel target = $region3
  $region8: #{controlnet_block.1} parent=0 // loop_exit
    _

</llo_original>
